<compile_context>
chip_gen: v5e
topology: v5e:2x2
jax: 0.10.0
libtpu: 0.0.40
codegen_flags: <defaults>
</compile_context>

<pallas_src>
from functools import partial

import jax
import jax.numpy as jnp
import numpy as np
from jax import lax
from jax.experimental import pallas as pl
from jax.experimental.pallas import tpu as pltpu

# ---------------------------------------------------------------------------
# Model dimensions (small, synthetic — the module's __init__ only fixes structure).
OBS_DIM = 16           # LSTM input size
HIDDEN = 32            # LSTM hidden size
NUM_LAYERS = 2         # LSTM layers
ACTOR_HIDDEN = (64, 32)
NUM_ACTIONS = 12

LANES = 128
assert 4 * HIDDEN == LANES, "gate vector must be exactly one lane-width wide"

# ---- packed weight-slab layout (rows of a (W_ROWS, 128) f32 array) --------
ROW_WIH0 = 0                              # (OBS_DIM, 4H)  -- fused L0 block = rows [0,48)
ROW_WHH0 = ROW_WIH0 + OBS_DIM             # (H, 4H)
ROW_WIH1 = ROW_WHH0 + HIDDEN              # (H, 4H)        -- fused L1 block = rows [48,112)
ROW_WHH1 = ROW_WIH1 + HIDDEN              # (H, 4H)
ROW_WA0 = ROW_WHH1 + HIDDEN               # (H, 64) zero-padded to 128 lanes (32 rows)
ROW_WA1 = ROW_WA0 + HIDDEN                # 128-row block: rows [0,64)=wa1.T, rest zero
ROW_WA2 = ROW_WA1 + LANES                 # 128-row block: rows [0,32)=wa2.T, rest zero
ROW_MISC = ROW_WA2 + LANES                # misc block (biases + gate constants)
ROW_B0 = ROW_MISC + 0                     # bih0 + bhh0            (1, 128)
ROW_B1 = ROW_MISC + 1                     # bih1 + bhh1            (1, 128)
ROW_BA0 = ROW_MISC + 2                    # actor bias 0, padded   (1, 128)
ROW_BA1 = ROW_MISC + 3                    # actor bias 1, padded   (1, 128)
ROW_BA2 = ROW_MISC + 4                    # actor bias 2, padded   (1, 128)
ROW_GSCALE = ROW_MISC + 5                 # per-lane gate scale (0.5 sigmoid / 1.0 tanh)
ROW_GBETA = ROW_MISC + 6                  # per-lane gate offset (0.5 sigmoid / 0.0 tanh)
W_ROWS = ROW_MISC + 8                     # = 408 rows, multiple of 8

# ---- packed state-slab layout (rows of an (8, 128) f32 array) --------------
ROW_H0, ROW_H1, ROW_C0, ROW_C1 = 0, 1, 2, 3
STATE_ROWS = 8


# ---------------------------------------------------------------------------
# Kernel: full rollout (T steps) in one call; h/c carried in vregs.
# ---------------------------------------------------------------------------
def policy_lstm_rollout_kernel(x_ref, state_ref, w_ref, act_ref, state_out_ref):
    f32 = jnp.float32
    H = HIDDEN
    T = x_ref.shape[0]

    def dot(a, b):
        return jnp.dot(a, b, preferred_element_type=f32)

    # Small rows hoisted out of the timestep loop (each (1, 128)).
    b0 = w_ref[ROW_B0:ROW_B0 + 1, :]
    b1 = w_ref[ROW_B1:ROW_B1 + 1, :]
    ba0 = w_ref[ROW_BA0:ROW_BA0 + 1, :]
    ba1 = w_ref[ROW_BA1:ROW_BA1 + 1, :]
    ba2 = w_ref[ROW_BA2:ROW_BA2 + 1, :]
    gscale = w_ref[ROW_GSCALE:ROW_GSCALE + 1, :]
    gbeta = w_ref[ROW_GBETA:ROW_GBETA + 1, :]

    def lstm_cell(gate_pre, c_prev):
        # One EUP tanh over the whole 4H = 128-lane gate vector:
        #   i/f/o lanes: 0.5*tanh(0.5*z) + 0.5 == sigmoid(z);  g lanes: tanh(z).
        a = gscale * jnp.tanh(gate_pre * gscale) + gbeta
        # TODO(synk): the 32-lane gate slices below could be replaced by full-width
        #             pltpu.roll alignment; kept as slices for robustness (small win).
        i = a[:, 0 * H:1 * H]
        f = a[:, 1 * H:2 * H]
        g = a[:, 2 * H:3 * H]
        o = a[:, 3 * H:4 * H]
        c_new = f * c_prev + i * g
        h_new = o * jnp.tanh(c_new)
        return h_new, c_new

    def elu(z):
        return jnp.where(z > 0.0, z, jnp.exp(z) - 1.0)

    def step(t, carry):
        h0, h1, c0, c1 = carry                               # each (1, H), in vregs
        x_t = x_ref[pl.ds(t, 1), :]                          # (1, OBS_DIM)

        # LSTM layer 0: fused [x | h0] @ [Wih0; Whh0]  (weight rows contiguous)
        g0 = dot(jnp.concatenate([x_t, h0], axis=1),
                 w_ref[ROW_WIH0:ROW_WIH0 + OBS_DIM + H, :]) + b0
        h0n, c0n = lstm_cell(g0, c0)

        # LSTM layer 1: fused [h0n | h1] @ [Wih1; Whh1]
        g1 = dot(jnp.concatenate([h0n, h1], axis=1),
                 w_ref[ROW_WIH1:ROW_WIH1 + 2 * H, :]) + b1
        h1n, c1n = lstm_cell(g1, c1)

        # Actor MLP: all activations stay 128 lanes wide; padded weight rows/lanes are
        # zero, so padded lanes stay exactly zero and no lane slicing is needed.
        y = elu(dot(h1n, w_ref[ROW_WA0:ROW_WA0 + H, :]) + ba0)          # valid lanes [0,64)
        y = elu(dot(y, w_ref[ROW_WA1:ROW_WA1 + LANES, :]) + ba1)        # valid lanes [0,32)
        act = dot(y, w_ref[ROW_WA2:ROW_WA2 + LANES, :]) + ba2           # valid lanes [0,12)

        act_ref[pl.ds(t, 1), :] = act                        # dense 128-lane row store
        return (h0n, h1n, c0n, c1n)

    carry = (state_ref[ROW_H0:ROW_H0 + 1, 0:H],
             state_ref[ROW_H1:ROW_H1 + 1, 0:H],
             state_ref[ROW_C0:ROW_C0 + 1, 0:H],
             state_ref[ROW_C1:ROW_C1 + 1, 0:H])

    if T <= 8:
        # Fully static unrolled loop (keeps the LLO scheduler's hands free).
        for t in range(T):
            carry = step(t, carry)
    else:
        carry = lax.fori_loop(0, T, step, carry)

    h0, h1, c0, c1 = carry
    # Build the (8, 128) final-state slab in vregs and do ONE dense store.
    hc = jnp.concatenate([h0, h1, c0, c1], axis=0)                       # (4, H)
    hc = jnp.concatenate([hc, jnp.zeros((4, LANES - H), f32)], axis=1)   # (4, 128)
    state_out_ref[...] = jnp.concatenate([hc, jnp.zeros((4, LANES), f32)], axis=0)


# ---------------------------------------------------------------------------
# Parameter construction / one-time packing
# ---------------------------------------------------------------------------
def make_params(key):
    """Deterministic synthetic parameters in PyTorch layout."""
    keys = jax.random.split(key, 16)
    k = iter(keys)
    s = 0.1

    def rnd(kk, shape):
        return (s * jax.random.normal(kk, shape)).astype(jnp.float32)

    p = {}
    p["wih0"] = rnd(next(k), (4 * HIDDEN, OBS_DIM))
    p["whh0"] = rnd(next(k), (4 * HIDDEN, HIDDEN))
    p["bih0"] = rnd(next(k), (4 * HIDDEN,))
    p["bhh0"] = rnd(next(k), (4 * HIDDEN,))
    p["wih1"] = rnd(next(k), (4 * HIDDEN, HIDDEN))
    p["whh1"] = rnd(next(k), (4 * HIDDEN, HIDDEN))
    p["bih1"] = rnd(next(k), (4 * HIDDEN,))
    p["bhh1"] = rnd(next(k), (4 * HIDDEN,))
    p["wa0"] = rnd(next(k), (ACTOR_HIDDEN[0], HIDDEN))
    p["ba0"] = rnd(next(k), (ACTOR_HIDDEN[0],))
    p["wa1"] = rnd(next(k), (ACTOR_HIDDEN[1], ACTOR_HIDDEN[0]))
    p["ba1"] = rnd(next(k), (ACTOR_HIDDEN[1],))
    p["wa2"] = rnd(next(k), (NUM_ACTIONS, ACTOR_HIDDEN[1]))
    p["ba2"] = rnd(next(k), (NUM_ACTIONS,))
    return p


def prepare_params(p):
    """ONE-TIME packing of all weights/biases into a single lane-aligned f32 slab."""
    W = np.zeros((W_ROWS, LANES), np.float32)
    # Fused LSTM blocks (rows contiguous so [x|h] multiplies [Wih; Whh]).
    W[ROW_WIH0:ROW_WIH0 + OBS_DIM, :] = np.asarray(p["wih0"]).T
    W[ROW_WHH0:ROW_WHH0 + HIDDEN, :] = np.asarray(p["whh0"]).T
    W[ROW_WIH1:ROW_WIH1 + HIDDEN, :] = np.asarray(p["wih1"]).T
    W[ROW_WHH1:ROW_WHH1 + HIDDEN, :] = np.asarray(p["whh1"]).T
    # Actor blocks, zero-padded so 128-lane activations feed straight through.
    W[ROW_WA0:ROW_WA0 + HIDDEN, :ACTOR_HIDDEN[0]] = np.asarray(p["wa0"]).T
    W[ROW_WA1:ROW_WA1 + ACTOR_HIDDEN[0], :ACTOR_HIDDEN[1]] = np.asarray(p["wa1"]).T
    W[ROW_WA2:ROW_WA2 + ACTOR_HIDDEN[1], :NUM_ACTIONS] = np.asarray(p["wa2"]).T
    # Folded LSTM biases, actor biases (zero-padded to 128 lanes).
    W[ROW_B0, :] = np.asarray(p["bih0"]) + np.asarray(p["bhh0"])
    W[ROW_B1, :] = np.asarray(p["bih1"]) + np.asarray(p["bhh1"])
    W[ROW_BA0, :ACTOR_HIDDEN[0]] = np.asarray(p["ba0"])
    W[ROW_BA1, :ACTOR_HIDDEN[1]] = np.asarray(p["ba1"])
    W[ROW_BA2, :NUM_ACTIONS] = np.asarray(p["ba2"])
    # Per-lane gate activation constants (i,f,o -> sigmoid lanes; g -> tanh lanes).
    lane = np.arange(LANES)
    is_g = (lane >= 2 * HIDDEN) & (lane < 3 * HIDDEN)
    W[ROW_GSCALE, :] = np.where(is_g, 1.0, 0.5)
    W[ROW_GBETA, :] = np.where(is_g, 0.0, 0.5)
    return jnp.asarray(W)


def init_state():
    """Zeroed packed state slab (== register_buffer zeros / reset_memory())."""
    return jnp.zeros((STATE_ROWS, LANES), jnp.float32)


# ---------------------------------------------------------------------------
# Jitted rollout wrapper: one pallas_call per rollout, state slab donated/aliased.
# ---------------------------------------------------------------------------
_VMEM_SPEC = pl.BlockSpec(memory_space=pltpu.MemorySpace.VMEM)


@partial(jax.jit, donate_argnums=(1,), static_argnames=())
def policy_rollout(xs, state, weights):
    """xs: (T, OBS_DIM); state: (8,128) packed slab (DONATED); weights: (408,128) slab.
    Returns (actions_padded (T, 128) -- lanes >= NUM_ACTIONS are 0, new_state slab)."""
    T = xs.shape[0]
    actions, new_state = pl.pallas_call(
        policy_lstm_rollout_kernel,
        out_shape=(jax.ShapeDtypeStruct((T, LANES), jnp.float32),
                   jax.ShapeDtypeStruct((STATE_ROWS, LANES), jnp.float32)),
        in_specs=[_VMEM_SPEC, _VMEM_SPEC, _VMEM_SPEC],
        out_specs=(_VMEM_SPEC, _VMEM_SPEC),
        input_output_aliases={1: 1},     # state slab updated in place (register_buffer)
    )(xs, state, weights)
    return actions, new_state


# ---------------------------------------------------------------------------
# Exact float64 numpy reference (PyTorch layout / math) for validation
# ---------------------------------------------------------------------------
def reference_rollout_np(xs, h, c, p):
    p64 = {k: np.asarray(v, np.float64) for k, v in p.items()}
    xs = np.asarray(xs, np.float64)
    h = np.asarray(h, np.float64).copy()     # (2, 1, H)
    c = np.asarray(c, np.float64).copy()
    H = HIDDEN

    def sigmoid(z):
        return 1.0 / (1.0 + np.exp(-z))

    def elu(z):
        return np.where(z > 0, z, np.expm1(z))

    layers = [(p64["wih0"], p64["whh0"], p64["bih0"], p64["bhh0"]),
              (p64["wih1"], p64["whh1"], p64["bih1"], p64["bhh1"])]
    acts = []
    for t in range(xs.shape[0]):
        inp = xs[t:t + 1]
        for l, (wih, whh, bih, bhh) in enumerate(layers):
            g = inp @ wih.T + bih + h[l] @ whh.T + bhh
            i = sigmoid(g[:, 0:H]); f = sigmoid(g[:, H:2 * H])
            gg = np.tanh(g[:, 2 * H:3 * H]); o = sigmoid(g[:, 3 * H:4 * H])
            c[l] = f * c[l] + i * gg
            h[l] = o * np.tanh(c[l])
            inp = h[l]
        y = elu(inp @ p64["wa0"].T + p64["ba0"])
        y = elu(y @ p64["wa1"].T + p64["ba1"])
        acts.append(y @ p64["wa2"].T + p64["ba2"])
    return np.concatenate(acts, axis=0), h, c


def _check(name, got, want, atol=1e-3):
    # Loose-but-meaningful tolerance: covers MXU f32-pass / transcendental ulp
    # differences; any structural/layout/gate-order bug produces errors >= 1e-1.
    got = np.asarray(got, np.float64)
    want = np.asarray(want, np.float64)
    err = float(np.max(np.abs(got - want))) if got.size else 0.0
    assert err < atol, f"{name}: max abs err {err:.3e} (atol {atol:.0e})"


if __name__ == "__main__":
    key = jax.random.PRNGKey(0)
    kx1, kx2, kp = jax.random.split(key, 3)

    params = make_params(kp)
    weights = prepare_params(params)          # one-time packing, outside the jitted step

    # -------- step 1: T = 1, exactly one forward() call of the PyTorch module --------
    state0 = init_state()                     # zeroed buffers, like the registered buffers
    x1 = jax.random.normal(kx1, (1, OBS_DIM), dtype=jnp.float32)
    act1, state1 = policy_rollout(x1, state0, weights)
    jax.block_until_ready((act1, state1))

    h_ref = np.zeros((NUM_LAYERS, 1, HIDDEN), np.float64)
    c_ref = np.zeros((NUM_LAYERS, 1, HIDDEN), np.float64)
    acts_r1, h_ref, c_ref = reference_rollout_np(x1, h_ref, c_ref, params)
    _check("act step1", np.asarray(act1)[:, :NUM_ACTIONS], acts_r1)
    _check("h step1", np.asarray(state1)[0:2, :HIDDEN], h_ref[:, 0, :])
    _check("c step1", np.asarray(state1)[2:4, :HIDDEN], c_ref[:, 0, :])

    # -------- fused 8-step rollout in ONE pallas_call (state carried in-kernel) ------
    T = 8
    xs = jax.random.normal(kx2, (T, OBS_DIM), dtype=jnp.float32)
    acts, state2 = policy_rollout(xs, state1, weights)   # state1 is donated here
    jax.block_until_ready((acts, state2))

    acts_r, h_ref, c_ref = reference_rollout_np(xs, h_ref, c_ref, params)
    _check("act rollout", np.asarray(acts)[:, :NUM_ACTIONS], acts_r)
    _check("h rollout", np.asarray(state2)[0:2, :HIDDEN], h_ref[:, 0, :])
    _check("c rollout", np.asarray(state2)[2:4, :HIDDEN], c_ref[:, 0, :])

    print("KERNEL_OK")
</pallas_src>

<mosaic_0001>
module attributes {stable_mosaic.version = 11 : i64} {
  func.func @policy_lstm_rollout_kernel(%arg0: memref<1x16xf32, #tpu.memory_space<vmem>>, %arg1: memref<8x128xf32, #tpu.memory_space<vmem>>, %arg2: memref<408x128xf32, #tpu.memory_space<vmem>>, %arg3: memref<1x128xf32, #tpu.memory_space<vmem>>, %arg4: memref<8x128xf32, #tpu.memory_space<vmem>>) attributes {dimension_semantics = [], scalar_prefetch = 0 : i64, scratch_operands = 0 : i64, tpu.core_type = #tpu.core_type<tc>} {
    %c400 = arith.constant 400 : index
    %c0 = arith.constant 0 : index
    %0 = vector.load %arg2[%c400, %c0] : memref<408x128xf32, #tpu.memory_space<vmem>>, vector<1x128xf32>
    %c401 = arith.constant 401 : index
    %c0_0 = arith.constant 0 : index
    %1 = vector.load %arg2[%c401, %c0_0] : memref<408x128xf32, #tpu.memory_space<vmem>>, vector<1x128xf32>
    %c402 = arith.constant 402 : index
    %c0_1 = arith.constant 0 : index
    %2 = vector.load %arg2[%c402, %c0_1] : memref<408x128xf32, #tpu.memory_space<vmem>>, vector<1x128xf32>
    %c403 = arith.constant 403 : index
    %c0_2 = arith.constant 0 : index
    %3 = vector.load %arg2[%c403, %c0_2] : memref<408x128xf32, #tpu.memory_space<vmem>>, vector<1x128xf32>
    %c404 = arith.constant 404 : index
    %c0_3 = arith.constant 0 : index
    %4 = vector.load %arg2[%c404, %c0_3] : memref<408x128xf32, #tpu.memory_space<vmem>>, vector<1x128xf32>
    %c405 = arith.constant 405 : index
    %c0_4 = arith.constant 0 : index
    %5 = vector.load %arg2[%c405, %c0_4] : memref<408x128xf32, #tpu.memory_space<vmem>>, vector<1x128xf32>
    %c406 = arith.constant 406 : index
    %c0_5 = arith.constant 0 : index
    %6 = vector.load %arg2[%c406, %c0_5] : memref<408x128xf32, #tpu.memory_space<vmem>>, vector<1x128xf32>
    %c0_6 = arith.constant 0 : index
    %c0_7 = arith.constant 0 : index
    %7 = vector.load %arg1[%c0_6, %c0_7] : memref<8x128xf32, #tpu.memory_space<vmem>>, vector<1x32xf32>
    %c1 = arith.constant 1 : index
    %c0_8 = arith.constant 0 : index
    %8 = vector.load %arg1[%c1, %c0_8] : memref<8x128xf32, #tpu.memory_space<vmem>>, vector<1x32xf32>
    %c2 = arith.constant 2 : index
    %c0_9 = arith.constant 0 : index
    %9 = vector.load %arg1[%c2, %c0_9] : memref<8x128xf32, #tpu.memory_space<vmem>>, vector<1x32xf32>
    %c3 = arith.constant 3 : index
    %c0_10 = arith.constant 0 : index
    %10 = vector.load %arg1[%c3, %c0_10] : memref<8x128xf32, #tpu.memory_space<vmem>>, vector<1x32xf32>
    %c0_11 = arith.constant 0 : index
    %c0_12 = arith.constant 0 : index
    %11 = vector.load %arg0[%c0_11, %c0_12] : memref<1x16xf32, #tpu.memory_space<vmem>>, vector<1x16xf32>
    %12 = tpu.concatenate %11, %7 in 1 : vector<1x16xf32>, vector<1x32xf32> -> vector<1x48xf32>
    %c0_13 = arith.constant 0 : index
    %c0_14 = arith.constant 0 : index
    %13 = vector.load %arg2[%c0_13, %c0_14] : memref<408x128xf32, #tpu.memory_space<vmem>>, vector<48x128xf32>
    %cst = arith.constant dense<0.000000e+00> : vector<1x128xf32>
    %14 = tpu.matmul %12, %13, %cst {dimension_numbers = #tpu.dot_dimension_numbers<[1], [0], [0], [1], [0, 0, 1, 1], [], []>} : vector<1x48xf32>, vector<48x128xf32>, vector<1x128xf32> -> vector<1x128xf32>
    %15 = arith.addf %14, %0 : vector<1x128xf32>
    %16 = arith.mulf %15, %5 : vector<1x128xf32>
    %17 = math.tanh %16 : vector<1x128xf32>
    %18 = arith.mulf %5, %17 : vector<1x128xf32>
    %19 = arith.addf %18, %6 : vector<1x128xf32>
    %20 = vector.extract_strided_slice %19 {offsets = [0, 0], sizes = [1, 32], strides = [1, 1]} : vector<1x128xf32> to vector<1x32xf32>
    %21 = vector.extract_strided_slice %19 {offsets = [0, 32], sizes = [1, 32], strides = [1, 1]} : vector<1x128xf32> to vector<1x32xf32>
    %22 = vector.extract_strided_slice %19 {offsets = [0, 64], sizes = [1, 32], strides = [1, 1]} : vector<1x128xf32> to vector<1x32xf32>
    %23 = vector.extract_strided_slice %19 {offsets = [0, 96], sizes = [1, 32], strides = [1, 1]} : vector<1x128xf32> to vector<1x32xf32>
    %24 = arith.mulf %21, %9 : vector<1x32xf32>
    %25 = arith.mulf %20, %22 : vector<1x32xf32>
    %26 = arith.addf %24, %25 : vector<1x32xf32>
    %27 = math.tanh %26 : vector<1x32xf32>
    %28 = arith.mulf %23, %27 : vector<1x32xf32>
    %29 = tpu.concatenate %28, %8 in 1 : vector<1x32xf32>, vector<1x32xf32> -> vector<1x64xf32>
    %c48 = arith.constant 48 : index
    %c0_15 = arith.constant 0 : index
    %30 = vector.load %arg2[%c48, %c0_15] : memref<408x128xf32, #tpu.memory_space<vmem>>, vector<64x128xf32>
    %cst_16 = arith.constant dense<0.000000e+00> : vector<1x128xf32>
    %31 = tpu.matmul %29, %30, %cst_16 {dimension_numbers = #tpu.dot_dimension_numbers<[1], [0], [0], [1], [0, 0, 1, 1], [], []>} : vector<1x64xf32>, vector<64x128xf32>, vector<1x128xf32> -> vector<1x128xf32>
    %32 = arith.addf %31, %1 : vector<1x128xf32>
    %33 = arith.mulf %32, %5 : vector<1x128xf32>
    %34 = math.tanh %33 : vector<1x128xf32>
    %35 = arith.mulf %5, %34 : vector<1x128xf32>
    %36 = arith.addf %35, %6 : vector<1x128xf32>
    %37 = vector.extract_strided_slice %36 {offsets = [0, 0], sizes = [1, 32], strides = [1, 1]} : vector<1x128xf32> to vector<1x32xf32>
    %38 = vector.extract_strided_slice %36 {offsets = [0, 32], sizes = [1, 32], strides = [1, 1]} : vector<1x128xf32> to vector<1x32xf32>
    %39 = vector.extract_strided_slice %36 {offsets = [0, 64], sizes = [1, 32], strides = [1, 1]} : vector<1x128xf32> to vector<1x32xf32>
    %40 = vector.extract_strided_slice %36 {offsets = [0, 96], sizes = [1, 32], strides = [1, 1]} : vector<1x128xf32> to vector<1x32xf32>
    %41 = arith.mulf %38, %10 : vector<1x32xf32>
    %42 = arith.mulf %37, %39 : vector<1x32xf32>
    %43 = arith.addf %41, %42 : vector<1x32xf32>
    %44 = math.tanh %43 : vector<1x32xf32>
    %45 = arith.mulf %40, %44 : vector<1x32xf32>
    %c112 = arith.constant 112 : index
    %c0_17 = arith.constant 0 : index
    %46 = vector.load %arg2[%c112, %c0_17] : memref<408x128xf32, #tpu.memory_space<vmem>>, vector<32x128xf32>
    %cst_18 = arith.constant dense<0.000000e+00> : vector<1x128xf32>
    %47 = tpu.matmul %45, %46, %cst_18 {dimension_numbers = #tpu.dot_dimension_numbers<[1], [0], [0], [1], [0, 0, 1, 1], [], []>} : vector<1x32xf32>, vector<32x128xf32>, vector<1x128xf32> -> vector<1x128xf32>
    %48 = arith.addf %47, %2 : vector<1x128xf32>
    %cst_19 = arith.constant 0.000000e+00 : f32
    %49 = vector.broadcast %cst_19 : f32 to vector<1x128xf32>
    %50 = arith.cmpf ogt, %48, %49 : vector<1x128xf32>
    %51 = math.exp %48 : vector<1x128xf32>
    %cst_20 = arith.constant 1.000000e+00 : f32
    %52 = vector.broadcast %cst_20 : f32 to vector<1x128xf32>
    %53 = arith.subf %51, %52 : vector<1x128xf32>
    %54 = arith.select %50, %48, %53 : vector<1x128xi1>, vector<1x128xf32>
    %c144 = arith.constant 144 : index
    %c0_21 = arith.constant 0 : index
    %55 = vector.load %arg2[%c144, %c0_21] : memref<408x128xf32, #tpu.memory_space<vmem>>, vector<128x128xf32>
    %cst_22 = arith.constant dense<0.000000e+00> : vector<1x128xf32>
    %56 = tpu.matmul %54, %55, %cst_22 {dimension_numbers = #tpu.dot_dimension_numbers<[1], [0], [0], [1], [0, 0, 1, 1], [], []>} : vector<1x128xf32>, vector<128x128xf32>, vector<1x128xf32> -> vector<1x128xf32>
    %57 = arith.addf %56, %3 : vector<1x128xf32>
    %cst_23 = arith.constant 0.000000e+00 : f32
    %58 = vector.broadcast %cst_23 : f32 to vector<1x128xf32>
    %59 = arith.cmpf ogt, %57, %58 : vector<1x128xf32>
    %60 = math.exp %57 : vector<1x128xf32>
    %cst_24 = arith.constant 1.000000e+00 : f32
    %61 = vector.broadcast %cst_24 : f32 to vector<1x128xf32>
    %62 = arith.subf %60, %61 : vector<1x128xf32>
    %63 = arith.select %59, %57, %62 : vector<1x128xi1>, vector<1x128xf32>
    %c272 = arith.constant 272 : index
    %c0_25 = arith.constant 0 : index
    %64 = vector.load %arg2[%c272, %c0_25] : memref<408x128xf32, #tpu.memory_space<vmem>>, vector<128x128xf32>
    %cst_26 = arith.constant dense<0.000000e+00> : vector<1x128xf32>
    %65 = tpu.matmul %63, %64, %cst_26 {dimension_numbers = #tpu.dot_dimension_numbers<[1], [0], [0], [1], [0, 0, 1, 1], [], []>} : vector<1x128xf32>, vector<128x128xf32>, vector<1x128xf32> -> vector<1x128xf32>
    %66 = arith.addf %65, %4 : vector<1x128xf32>
    %c0_27 = arith.constant 0 : index
    %c0_28 = arith.constant 0 : index
    %67 = vector.load %arg3[%c0_27, %c0_28] : memref<1x128xf32, #tpu.memory_space<vmem>>, vector<1x128xf32>
    tpu.vector_store %arg3[%c0_27, %c0_28], %66 {strides = array<i32>} : memref<1x128xf32, #tpu.memory_space<vmem>>, vector<1x128xf32>,
    %68 = tpu.concatenate %28, %45, %26, %43 in 0 : vector<1x32xf32>, vector<1x32xf32>, vector<1x32xf32>, vector<1x32xf32> -> vector<4x32xf32>
    %cst_29 = arith.constant 0.000000e+00 : f32
    %69 = vector.broadcast %cst_29 : f32 to vector<4x96xf32>
    %70 = tpu.concatenate %68, %69 in 1 : vector<4x32xf32>, vector<4x96xf32> -> vector<4x128xf32>
    %cst_30 = arith.constant 0.000000e+00 : f32
    %71 = vector.broadcast %cst_30 : f32 to vector<4x128xf32>
    %72 = tpu.concatenate %70, %71 in 0 : vector<4x128xf32>, vector<4x128xf32> -> vector<8x128xf32>
    %c0_31 = arith.constant 0 : index
    %c0_32 = arith.constant 0 : index
    %73 = vector.load %arg4[%c0_31, %c0_32] : memref<8x128xf32, #tpu.memory_space<vmem>>, vector<8x128xf32>
    tpu.vector_store %arg4[%c0_31, %c0_32], %72 {strides = array<i32>} : memref<8x128xf32, #tpu.memory_space<vmem>>, vector<8x128xf32>,
    return
  }
}

</mosaic_0001>

<llo_original>
// kernel: policy_rollout.1
$region0: #{policy_rollout.1}
  #allocation0 [shape = 'u32[]', space=smem, size = 0x4, offset = 0x4, fixed_abs, tag = 'smem constant byte address 0x4 - core index']
  #allocation1 [shape = 'u32[72,128]{1,0:T(1,128)}', space=vmem, size = 0x9000, scoped, tag = 'internal scratch']
  %s0 = inlined_call_operand.hbm [shape: f32[1,16], index: 0, kind: input, shape index: {}]
  %s1 = inlined_call_operand.hbm [shape: f32[8,128], index: 1, kind: input, shape index: {}, may-alias: {1,4}]
  %s2 = inlined_call_operand.hbm [shape: f32[408,128], index: 2, kind: input, shape index: {}]
  %s3 = inlined_call_operand.hbm [shape: f32[1,128], index: 3, kind: output, shape index: {0}]
  %s4 = inlined_call_operand.hbm [shape: f32[8,128], index: 4, kind: output, shape index: {1}, may-alias: {1,4}]
  %5 = xla_tuple %s3, %s4
  %s6 = sld [smem:[#allocation0]]
  $region42: #{policy_rollout.1} parent=0
    _
  %s8 = ssub.s32 1, %s6
  %s9 = scalar_select 0, %s8, %s6
  $region1: #{policy_rollout.1} parent=0
    #allocation2 [shape = 'u8[512]{0}', space=vmem, size = 0x400, scoped, tag = 'input window, operand 0, single buffered']
    #allocation3 [shape = 's32[1]{0}', space=sflag, size = 0x4, scoped, tag = 'scoped memory for policy_rollout.1']
    #allocation4 [shape = 's32[1]{0}', space=sflag, size = 0x4, scoped, tag = 'scoped memory for policy_rollout.1']
    #allocation5 [shape = 'u8[4096]{0}', space=vmem, size = 0x1000, scoped, tag = 'input window, operand 1, single buffered']
    #allocation6 [shape = 's32[1]{0}', space=sflag, size = 0x4, scoped, tag = 'scoped memory for policy_rollout.1']
    #allocation7 [shape = 'u8[208896]{0}', space=vmem, size = 0x33000, scoped, tag = 'input window, operand 2, single buffered']
    #allocation8 [shape = 'u8[512]{0}', space=vmem, size = 0x400, scoped, tag = 'output window, operand 0, single buffered']
    #allocation9 [shape = 'u8[4096]{0}', space=vmem, size = 0x1000, scoped, tag = 'output window, operand 1, single buffered']
    #allocation10 [shape = 's32[1]{0}', space=sflag, size = 0x4, scoped, tag = 'scoped memory for policy_rollout.1']
    %10 = vsyncpa [#allocation3], 0
    %11 = vsyncpa [#allocation6], 0
    %12 = vsyncpa [#allocation4], 0
    %13 = vsyncpa [#allocation10], 0
    // Predicated region
    $region2: #{policy_rollout.1} parent=1 // pred_check
      _
    $region3: #{policy_rollout.1} parent=1 // pred_check_branch
      %15 = sbr.rel (0) target = $region5
    $region4: #{policy_rollout.1} parent=1 // pred_region
      %17 = vsyncadd [#allocation3], 0
      %s19 = sshll.u32 %s0, 4
      %s20 = int_to_ptr.hbm [resolvable:$true] %s19
      %s21 = sshll.u32 [#allocation2], 4
      %s22 = int_to_ptr.vmem [resolvable:$true] %s21
      %24 = dma.hbm_to_vmem [thread:$0]  %s20, 16, %s22, [#allocation3]
    $region5: #{policy_rollout.1} parent=1 // pred_fallthru
      _
    // Predicated region
    $region6: #{policy_rollout.1} parent=1 // pred_check
      _
    $region7: #{policy_rollout.1} parent=1 // pred_check_branch
      %26 = sbr.rel (0) target = $region9
    $region8: #{policy_rollout.1} parent=1 // pred_region
      %28 = vsyncadd [#allocation6], 0
      %s30 = sshll.u32 %s1, 4
      %s31 = int_to_ptr.hbm [resolvable:$true] %s30
      %s32 = sshll.u32 [#allocation5], 4
      %s33 = int_to_ptr.vmem [resolvable:$true] %s32
      %35 = dma.hbm_to_vmem [thread:$0]  %s31, 128, %s33, [#allocation6]
    $region9: #{policy_rollout.1} parent=1 // pred_fallthru
      _
    // Predicated region
    $region10: #{policy_rollout.1} parent=1 // pred_check
      _
    $region11: #{policy_rollout.1} parent=1 // pred_check_branch
      %37 = sbr.rel (0) target = $region13
    $region12: #{policy_rollout.1} parent=1 // pred_region
      %39 = vsyncadd [#allocation6], 0
      %s40 = sshll.u32 %s2, 4
      %s41 = int_to_ptr.hbm [resolvable:$true] %s40
      %s42 = sshll.u32 [#allocation7], 4
      %s43 = int_to_ptr.vmem [resolvable:$true] %s42
      %48 = dma.hbm_to_vmem [thread:$0]  %s41, 6528, %s43, [#allocation6], 128, 128, 8
    $region13: #{policy_rollout.1} parent=1 // pred_fallthru
      _
    // Predicated region
    $region14: #{policy_rollout.1} parent=1 // pred_check
      _
    $region15: #{policy_rollout.1} parent=1 // pred_check_branch
      %50 = sbr.rel (0) target = $region17
    $region16: #{policy_rollout.1} parent=1 // pred_region
      %52 = dma.done [#allocation3], 16
    $region17: #{policy_rollout.1} parent=1 // pred_fallthru
      _
    // Predicated region
    $region18: #{policy_rollout.1} parent=1 // pred_check
      _
    $region19: #{policy_rollout.1} parent=1 // pred_check_branch
      %54 = sbr.rel (0) target = $region21
    $region20: #{policy_rollout.1} parent=1 // pred_region
      %56 = dma.done [#allocation6], 128
    $region21: #{policy_rollout.1} parent=1 // pred_fallthru
      _
    // Predicated region
    $region22: #{policy_rollout.1} parent=1 // pred_check
      _
    $region23: #{policy_rollout.1} parent=1 // pred_check_branch
      %58 = sbr.rel (0) target = $region25
    $region24: #{policy_rollout.1} parent=1 // pred_region
      %60 = dma.done [#allocation6], 6528
    $region25: #{policy_rollout.1} parent=1 // pred_fallthru
      _
    %v61 = vld [vmem:[#allocation7 + $0x190] sm:$0x1]
    %v62 = vld [vmem:[#allocation7 + $0x191] sm:$0x1]
    %v63 = vld [vmem:[#allocation7 + $0x192] sm:$0x1]
    %v64 = vld [vmem:[#allocation7 + $0x193] sm:$0x1]
    %v65 = vld [vmem:[#allocation7 + $0x194] sm:$0x1]
    %v66 = vld [vmem:[#allocation7 + $0x195] sm:$0x1]
    %v67 = vld [vmem:[#allocation7 + $0x196] sm:$0x1]
    %v68 = vld [vmem:[#allocation5] sm:$0x1]
    %v69 = vld [vmem:[#allocation5 + $0x1] sm:$0x1]
    %v70 = vld [vmem:[#allocation5 + $0x2] sm:$0x1]
    %v71 = vld [vmem:[#allocation5 + $0x3] sm:$0x1]
    %v72 = vld [vmem:[#allocation2] sm:$0x1]
    %74 = vrot.lane.b32.xlu0 %v68, 16
    %v75 = vpop.permute.xlu0 %74
    %vm77 = vcmask 130048
    %v78 = vsel %vm77, %v72, %v75
    %v79 = vld [vmem:[#allocation7] sm:$0xff]
    %v80 = vld [vmem:[#allocation7 + $0x8] sm:$0xff]
    %v81 = vld [vmem:[#allocation7 + $0x10] sm:$0xff]
    %v82 = vld [vmem:[#allocation7 + $0x18] sm:$0xff]
    %v83 = vld [vmem:[#allocation7 + $0x20] sm:$0xff]
    %v84 = vld [vmem:[#allocation7 + $0x28] sm:$0xff]
    %vm85 = vcmask 392192
    %v87 = vsel %vm85, %v78, 0
    %89 = vmatpush.msra.mxu0 0.0
    %90 = vmatpush.msra.mxu0 0.0
    %91 = vmatpush.msra.mxu0 0.0
    %92 = vmatpush.msra.mxu0 0.0
    %93 = vmatpush.msra.mxu0 0.0
    %94 = vmatpush.msra.mxu0 0.0
    %95 = vmatpush.msra.mxu0 0.0
    %96 = vmatpush.msra.mxu0 0.0
    %97 = vmatpush.msra.mxu0 0.0
    %98 = vmatpush.msra.mxu0 0.0
    %99 = vmatpush.msra.mxu0 %v84
    %100 = vmatpush.msra.mxu0 %v83
    %101 = vmatpush.msra.mxu0 %v82
    %102 = vmatpush.msra.mxu0 %v81
    %103 = vmatpush.msra.mxu0 %v80
    %104 = vmatpush.msra.mxu0 %v79
    %105 = vmatmul.f32.gmra.mxu0 %v87
    %v106 = vpop.f32.mrf.mxu0
    %v107 = vadd.f32 %v61, %v106
    %108 = vdwg.mxu0
    %v109 = vmul.f32 %v107, %v66
    %v110 = vtanh.pop %v109
    %v111 = vmul.f32 %v66, %v110
    %v112 = vadd.f32 %v111, %v67
    %114 = vrot.lane.b32.xlu0 %v70, 32
    %v115 = vpop.permute.xlu0 %114
    %v117 = vmul.f32 %v112, %v115
    %119 = vrot.lane.b32.xlu0 %v112, 64
    %v120 = vpop.permute.xlu0 %119
    %v122 = vmul.f32 %v112, %v120
    %124 = vrot.lane.b32.xlu0 %v122, 32
    %v125 = vpop.permute.xlu0 %124
    %v127 = vadd.f32 %v117, %v125
    %v128 = vtanh.pop %v127
    %130 = vrot.lane.b32.xlu0 %v128, 64
    %v131 = vpop.permute.xlu0 %130
    %v133 = vmul.f32 %v112, %v131
    %135 = vrot.lane.b32.xlu0 %v133, 32
    %v136 = vpop.permute.xlu0 %135
    %139 = vrot.lane.b32.xlu0 %v69, 32
    %v140 = vpop.permute.xlu0 %139
    %vm142 = vcmask 261120
    %v143 = vsel %vm142, %v136, %v140
    %v144 = vld [vmem:[#allocation7 + $0x30] sm:$0xff]
    %v145 = vld [vmem:[#allocation7 + $0x38] sm:$0xff]
    %v146 = vld [vmem:[#allocation7 + $0x40] sm:$0xff]
    %v147 = vld [vmem:[#allocation7 + $0x48] sm:$0xff]
    %v148 = vld [vmem:[#allocation7 + $0x50] sm:$0xff]
    %v149 = vld [vmem:[#allocation7 + $0x58] sm:$0xff]
    %v150 = vld [vmem:[#allocation7 + $0x60] sm:$0xff]
    %v151 = vld [vmem:[#allocation7 + $0x68] sm:$0xff]
    %vm152 = vcmask 523264
    %v154 = vsel %vm152, %v143, 0
    %156 = vmatpush.msra.mxu0 0.0
    %157 = vmatpush.msra.mxu0 0.0
    %158 = vmatpush.msra.mxu0 0.0
    %159 = vmatpush.msra.mxu0 0.0
    %160 = vmatpush.msra.mxu0 0.0
    %161 = vmatpush.msra.mxu0 0.0
    %162 = vmatpush.msra.mxu0 0.0
    %163 = vmatpush.msra.mxu0 0.0
    %164 = vmatpush.msra.mxu0 %v151
    %165 = vmatpush.msra.mxu0 %v150
    %166 = vmatpush.msra.mxu0 %v149
    %167 = vmatpush.msra.mxu0 %v148
    %168 = vmatpush.msra.mxu0 %v147
    %169 = vmatpush.msra.mxu0 %v146
    %170 = vmatpush.msra.mxu0 %v145
    %171 = vmatpush.msra.mxu0 %v144
    %172 = vmatmul.f32.gmra.mxu0 %v154
    %v173 = vpop.f32.mrf.mxu0
    %v174 = vadd.f32 %v62, %v173
    %175 = vdwg.mxu0
    %v176 = vmul.f32 %v174, %v66
    %v177 = vtanh.pop %v176
    %v178 = vmul.f32 %v66, %v177
    %v179 = vadd.f32 %v178, %v67
    %181 = vrot.lane.b32.xlu0 %v71, 32
    %v182 = vpop.permute.xlu0 %181
    %v184 = vmul.f32 %v179, %v182
    %186 = vrot.lane.b32.xlu0 %v179, 64
    %v187 = vpop.permute.xlu0 %186
    %v189 = vmul.f32 %v179, %v187
    %191 = vrot.lane.b32.xlu0 %v189, 32
    %v192 = vpop.permute.xlu0 %191
    %v194 = vadd.f32 %v184, %v192
    %v195 = vtanh.pop %v194
    %197 = vrot.lane.b32.xlu0 %v195, 64
    %v198 = vpop.permute.xlu0 %197
    %v200 = vmul.f32 %v179, %v198
    %v201 = vld [vmem:[#allocation7 + $0x70] sm:$0xff]
    %v202 = vld [vmem:[#allocation7 + $0x78] sm:$0xff]
    %v203 = vld [vmem:[#allocation7 + $0x80] sm:$0xff]
    %v204 = vld [vmem:[#allocation7 + $0x88] sm:$0xff]
    %206 = vrot.lane.b32.xlu0 %v200, 32
    %v207 = vpop.permute.xlu0 %206
    %v208 = vsel %vm142, %v207, 0
    %210 = vmatpush.msra.mxu0 0.0
    %211 = vmatpush.msra.mxu0 0.0
    %212 = vmatpush.msra.mxu0 0.0
    %213 = vmatpush.msra.mxu0 0.0
    %214 = vmatpush.msra.mxu0 0.0
    %215 = vmatpush.msra.mxu0 0.0
    %216 = vmatpush.msra.mxu0 0.0
    %217 = vmatpush.msra.mxu0 0.0
    %218 = vmatpush.msra.mxu0 0.0
    %219 = vmatpush.msra.mxu0 0.0
    %220 = vmatpush.msra.mxu0 0.0
    %221 = vmatpush.msra.mxu0 0.0
    %222 = vmatpush.msra.mxu0 %v204
    %223 = vmatpush.msra.mxu0 %v203
    %224 = vmatpush.msra.mxu0 %v202
    %225 = vmatpush.msra.mxu0 %v201
    %226 = vmatmul.f32.gmra.mxu0 %v208
    %v227 = vpop.f32.mrf.mxu0
    %v228 = vadd.f32 %v63, %v227
    %229 = vdwg.mxu0
    %vm230 = vcmp.gt.f32.partialorder %v228, 0.0
    %v231 = vmul.f32 %v228, 1.442695
    %v232 = vpow.pop %v231
    %v233 = vsub.f32 %v232, 1.0
    %v234 = vsel %vm230, %v228, %v233
    %v235 = vld [vmem:[#allocation7 + $0x90] sm:$0xff]
    %v236 = vld [vmem:[#allocation7 + $0x98] sm:$0xff]
    %v237 = vld [vmem:[#allocation7 + $0xa0] sm:$0xff]
    %v238 = vld [vmem:[#allocation7 + $0xa8] sm:$0xff]
    %v239 = vld [vmem:[#allocation7 + $0xb0] sm:$0xff]
    %v240 = vld [vmem:[#allocation7 + $0xb8] sm:$0xff]
    %v241 = vld [vmem:[#allocation7 + $0xc0] sm:$0xff]
    %v242 = vld [vmem:[#allocation7 + $0xc8] sm:$0xff]
    %v243 = vld [vmem:[#allocation7 + $0xd0] sm:$0xff]
    %v244 = vld [vmem:[#allocation7 + $0xd8] sm:$0xff]
    %v245 = vld [vmem:[#allocation7 + $0xe0] sm:$0xff]
    %v246 = vld [vmem:[#allocation7 + $0xe8] sm:$0xff]
    %v247 = vld [vmem:[#allocation7 + $0xf0] sm:$0xff]
    %v248 = vld [vmem:[#allocation7 + $0xf8] sm:$0xff]
    %v249 = vld [vmem:[#allocation7 + $0x100] sm:$0xff]
    %v250 = vld [vmem:[#allocation7 + $0x108] sm:$0xff]
    %251 = vmatpush.msra.mxu0 %v250
    %252 = vmatpush.msra.mxu0 %v249
    %253 = vmatpush.msra.mxu0 %v248
    %254 = vmatpush.msra.mxu0 %v247
    %255 = vmatpush.msra.mxu0 %v246
    %256 = vmatpush.msra.mxu0 %v245
    %257 = vmatpush.msra.mxu0 %v244
    %258 = vmatpush.msra.mxu0 %v243
    %259 = vmatpush.msra.mxu0 %v242
    %260 = vmatpush.msra.mxu0 %v241
    %261 = vmatpush.msra.mxu0 %v240
    %262 = vmatpush.msra.mxu0 %v239
    %263 = vmatpush.msra.mxu0 %v238
    %264 = vmatpush.msra.mxu0 %v237
    %265 = vmatpush.msra.mxu0 %v236
    %266 = vmatpush.msra.mxu0 %v235
    %267 = vmatmul.f32.gmra.mxu0 %v234
    %v268 = vpop.f32.mrf.mxu0
    %v269 = vadd.f32 %v64, %v268
    %270 = vdwg.mxu0
    %vm271 = vcmp.gt.f32.partialorder %v269, 0.0
    %v272 = vmul.f32 %v269, 1.442695
    %v273 = vpow.pop %v272
    %v274 = vsub.f32 %v273, 1.0
    %v275 = vsel %vm271, %v269, %v274
    %v276 = vld [vmem:[#allocation7 + $0x110] sm:$0xff]
    %v277 = vld [vmem:[#allocation7 + $0x118] sm:$0xff]
    %v278 = vld [vmem:[#allocation7 + $0x120] sm:$0xff]
    %v279 = vld [vmem:[#allocation7 + $0x128] sm:$0xff]
    %v280 = vld [vmem:[#allocation7 + $0x130] sm:$0xff]
    %v281 = vld [vmem:[#allocation7 + $0x138] sm:$0xff]
    %v282 = vld [vmem:[#allocation7 + $0x140] sm:$0xff]
    %v283 = vld [vmem:[#allocation7 + $0x148] sm:$0xff]
    %v284 = vld [vmem:[#allocation7 + $0x150] sm:$0xff]
    %v285 = vld [vmem:[#allocation7 + $0x158] sm:$0xff]
    %v286 = vld [vmem:[#allocation7 + $0x160] sm:$0xff]
    %v287 = vld [vmem:[#allocation7 + $0x168] sm:$0xff]
    %v288 = vld [vmem:[#allocation7 + $0x170] sm:$0xff]
    %v289 = vld [vmem:[#allocation7 + $0x178] sm:$0xff]
    %v290 = vld [vmem:[#allocation7 + $0x180] sm:$0xff]
    %v291 = vld [vmem:[#allocation7 + $0x188] sm:$0xff]
    %292 = vmatpush.msra.mxu0 %v291
    %293 = vmatpush.msra.mxu0 %v290
    %294 = vmatpush.msra.mxu0 %v289
    %295 = vmatpush.msra.mxu0 %v288
    %296 = vmatpush.msra.mxu0 %v287
    %297 = vmatpush.msra.mxu0 %v286
    %298 = vmatpush.msra.mxu0 %v285
    %299 = vmatpush.msra.mxu0 %v284
    %300 = vmatpush.msra.mxu0 %v283
    %301 = vmatpush.msra.mxu0 %v282
    %302 = vmatpush.msra.mxu0 %v281
    %303 = vmatpush.msra.mxu0 %v280
    %304 = vmatpush.msra.mxu0 %v279
    %305 = vmatpush.msra.mxu0 %v278
    %306 = vmatpush.msra.mxu0 %v277
    %307 = vmatpush.msra.mxu0 %v276
    %308 = vmatmul.f32.gmra.mxu0 %v275
    %v309 = vpop.f32.mrf.mxu0
    %v310 = vadd.f32 %v65, %v309
    %311 = vdwg.mxu0
    %312 = vst [vmem:[#allocation8] sm:$0x1] %v310
    %v313 = vrot.slane %v200, 7
    %v316 = vrot.slane %v127, 6
    %317 = vrot.lane.b32.xlu0 %v316, 64
    %v318 = vpop.permute.xlu0 %317
    %v321 = vrot.slane %v194, 5
    %322 = vrot.lane.b32.xlu0 %v321, 64
    %v323 = vpop.permute.xlu0 %322
    %vm325 = vcmask 1040384
    %v326 = vsel %vm325, %v133, %v313
    %vm327 = vcmask 1041408
    %v328 = vsel %vm327, %v326, %v318
    %vm329 = vcmask 1042432
    %v330 = vsel %vm329, %v328, %v323
    %332 = vrot.lane.b32.xlu0 %v330, 32
    %v333 = vpop.permute.xlu0 %332
    %v335 = vsel %vm142, %v333, 0.0
    %vm336 = vcmask 1043456
    %v337 = vsel %vm336, %v335, 0.0
    %338 = vst [vmem:[#allocation9] sm:$0xff] %v337
    // Predicated region
    $region26: #{policy_rollout.1} parent=1 // pred_check
      _
    $region27: #{policy_rollout.1} parent=1 // pred_check_branch
      %340 = sbr.rel (0) target = $region29
    $region28: #{policy_rollout.1} parent=1 // pred_region
      %342 = vsyncadd [#allocation4], 0
      %s344 = sshll.u32 [#allocation8], 4
      %s345 = int_to_ptr.vmem [resolvable:$true] %s344
      %s346 = sshll.u32 %s3, 4
      %s347 = int_to_ptr.hbm [resolvable:$true] %s346
      %349 = dma.vmem_to_hbm [thread:$0]  %s345, 16, %s347, [#allocation4]
    $region29: #{policy_rollout.1} parent=1 // pred_fallthru
      _
    // Predicated region
    $region30: #{policy_rollout.1} parent=1 // pred_check
      _
    $region31: #{policy_rollout.1} parent=1 // pred_check_branch
      %351 = sbr.rel (0) target = $region33
    $region32: #{policy_rollout.1} parent=1 // pred_region
      %353 = vsyncadd [#allocation10], 0
      %s355 = sshll.u32 [#allocation9], 4
      %s356 = int_to_ptr.vmem [resolvable:$true] %s355
      %s357 = sshll.u32 %s4, 4
      %s358 = int_to_ptr.hbm [resolvable:$true] %s357
      %360 = dma.vmem_to_hbm [thread:$0]  %s356, 128, %s358, [#allocation10]
    $region33: #{policy_rollout.1} parent=1 // pred_fallthru
      _
    // Predicated region
    $region34: #{policy_rollout.1} parent=1 // pred_check
      _
    $region35: #{policy_rollout.1} parent=1 // pred_check_branch
      %362 = sbr.rel (0) target = $region37
    $region36: #{policy_rollout.1} parent=1 // pred_region
      %364 = dma.done [#allocation4], 16
    $region37: #{policy_rollout.1} parent=1 // pred_fallthru
      _
    // Predicated region
    $region38: #{policy_rollout.1} parent=1 // pred_check
      _
    $region39: #{policy_rollout.1} parent=1 // pred_check_branch
      %366 = sbr.rel (0) target = $region41
    $region40: #{policy_rollout.1} parent=1 // pred_region
      %368 = dma.done [#allocation10], 128
    $region41: #{policy_rollout.1} parent=1 // pred_fallthru
      _
    %369 = vsyncpa [#allocation3], 1
    %370 = vsyncpa [#allocation6], 1
    %371 = vsyncpa [#allocation4], 1
    %372 = vsyncpa [#allocation10], 1

</llo_original>
